<compile_context>
chip_gen: v5e
topology: v5e:2x2
jax: 0.10.0
libtpu: 0.0.40
codegen_flags: <defaults>
</compile_context>

<pallas_src>
import functools

import jax
import jax.numpy as jnp
from jax.experimental import pallas as pl
from jax.experimental.pallas import tpu as pltpu

_MIB = 1 << 20
# Conservative budget for the double-buffered in+out data tiles: fits the
# default / raised scoped-VMEM limit on v5e (16 MiB phys 128), v6e (32/128)
# and v7x (32/64) once we raise vmem_limit_bytes below.
_DATA_VMEM_BUDGET = 20 * _MIB
_VMEM_LIMIT_CAP = 48 * _MIB     # < 64 MiB physical on v7x -> safe on all gens


# ----------------------------------------------------------------------------
# Kernel bodies (compute always in f32; I/O in the array's native dtype)
# ----------------------------------------------------------------------------
def _rms_normed(x, *, d_x, eps, partial_size):
    """x: (rows_blk, d) f32 -> x / (rms_x + eps), exact torch semantics."""
    if partial_size is None:
        ss = jnp.sum(x * x, axis=-1, keepdims=True)                 # (rows, 1)
    elif partial_size % 128 == 0:
        # Lane-aligned static slice: no iota/compare/select VPU filler.
        px = x[:, :partial_size]
        ss = jnp.sum(px * px, axis=-1, keepdims=True)
    else:
        col = jax.lax.broadcasted_iota(jnp.int32, x.shape, dimension=x.ndim - 1)
        xm = jnp.where(col < partial_size, x, jnp.zeros_like(x))
        ss = jnp.sum(xm * xm, axis=-1, keepdims=True)
    norm_x = jnp.sqrt(ss)                                            # ||x||_2
    rms_x = norm_x * (d_x ** -0.5)
    # Exact divide on a (rows, 1) vector; eps added to rms, NOT inside sqrt.
    inv = 1.0 / (rms_x + eps)
    return x * inv


def _rmsnorm_kernel(x_ref, scale_ref, o_ref, *, d_x, eps, partial_size):
    x = x_ref[...].astype(jnp.float32)
    xn = _rms_normed(x, d_x=d_x, eps=eps, partial_size=partial_size)
    o_ref[...] = (xn * scale_ref[...]).astype(o_ref.dtype)


def _rmsnorm_bias_kernel(x_ref, scale_ref, offset_ref, o_ref, *, d_x, eps,
                         partial_size):
    x = x_ref[...].astype(jnp.float32)
    xn = _rms_normed(x, d_x=d_x, eps=eps, partial_size=partial_size)
    o_ref[...] = (xn * scale_ref[...] + offset_ref[...]).astype(o_ref.dtype)


# ----------------------------------------------------------------------------
# Tiling helper
# ----------------------------------------------------------------------------
def _choose_block_rows(rows, d, x_bytes, out_bytes):
    row_align = 16 if (x_bytes < 4 or out_bytes < 4) else 8
    if rows < 2 * row_align:
        return rows                      # single full block (full-dim is legal)
    # Bytes per row of the double-buffered in + out tiles.
    per_row = 2 * d * (x_bytes + out_bytes)
    br = _DATA_VMEM_BUDGET // max(per_row, 1)
    br = (br // row_align) * row_align
    br = max(br, row_align)
    if br >= rows:
        # Budget allows the whole array: still split into >= 2 "parallel" steps
        # so both v7x TensorCores issue DMAs.
        half = -(-rows // 2)
        br = -(-half // row_align) * row_align
    return min(br, rows)


# ----------------------------------------------------------------------------
# Wrapper
# ----------------------------------------------------------------------------
def rmsnorm_pallas(x, scale, offset=None, *, p=-1.0, eps=1e-8):
    """RMSNorm over the last dim of x. scale/offset have shape (d,)."""
    orig_shape = x.shape
    orig_dtype = x.dtype
    d = int(orig_shape[-1])
    rows = 1
    for s in orig_shape[:-1]:
        rows *= int(s)
    rows = max(rows, 1)

    x2 = x.reshape(rows, d)                              # keep native dtype
    scale2 = jnp.asarray(scale, jnp.float32).reshape(1, d)

    if p < 0.0 or p > 1.0:
        partial_size, d_x = None, d                      # full RMSNorm (default)
    else:
        partial_size = int(d * p)
        if partial_size == 0:
            raise ValueError("partial RMSNorm with int(d*p)==0 is degenerate")
        d_x = partial_size

    x_bytes = jnp.dtype(orig_dtype).itemsize
    out_bytes = x_bytes
    block_rows = _choose_block_rows(rows, d, x_bytes, out_bytes)
    grid = (pl.cdiv(rows, block_rows),)

    in_specs = [
        pl.BlockSpec((block_rows, d), lambda i: (i, 0)),
        pl.BlockSpec((1, d), lambda i: (0, 0)),
    ]
    args = [x2, scale2]
    if offset is not None:
        kernel = functools.partial(
            _rmsnorm_bias_kernel, d_x=d_x, eps=eps, partial_size=partial_size)
        in_specs.append(pl.BlockSpec((1, d), lambda i: (0, 0)))
        args.append(jnp.asarray(offset, jnp.float32).reshape(1, d))
    else:
        kernel = functools.partial(
            _rmsnorm_kernel, d_x=d_x, eps=eps, partial_size=partial_size)

    # Scoped-VMEM limit: enough for the double-buffered tiles + params + margin,
    # capped below v7x's 64 MiB physical VMEM.
    needed = 2 * block_rows * d * (x_bytes + out_bytes) + 4 * d * 4 + 4 * _MIB
    vmem_limit = int(min(max(needed, 32 * _MIB), _VMEM_LIMIT_CAP))

    out = pl.pallas_call(
        kernel,
        out_shape=jax.ShapeDtypeStruct((rows, d), orig_dtype),
        grid=grid,
        in_specs=in_specs,
        out_specs=pl.BlockSpec((block_rows, d), lambda i: (i, 0)),
        compiler_params=pltpu.CompilerParams(
            dimension_semantics=("parallel",),
            vmem_limit_bytes=vmem_limit),
    )(*args)
    return out.reshape(orig_shape)


# ----------------------------------------------------------------------------
# Pure-JAX reference mirroring the PyTorch module line by line
# ----------------------------------------------------------------------------
def rmsnorm_reference(x, scale, offset=None, *, p=-1.0, eps=1e-8):
    d = x.shape[-1]
    if p < 0.0 or p > 1.0:
        norm_x = jnp.sqrt(jnp.sum(x * x, axis=-1, keepdims=True))
        d_x = d
    else:
        partial_size = int(d * p)
        px = x[..., :partial_size]
        norm_x = jnp.sqrt(jnp.sum(px * px, axis=-1, keepdims=True))
        d_x = partial_size
    rms_x = norm_x * d_x ** (-0.5)
    x_normed = x / (rms_x + eps)
    out = scale * x_normed
    if offset is not None:
        out = out + offset
    return out


# ----------------------------------------------------------------------------
if __name__ == "__main__":
    # Small shapes: seq=8, batch=2, d_model=128 (feature dim lane-dense).
    S, B, D = 8, 2, 128

    key = jax.random.PRNGKey(0)
    k_x, k_s, k_o = jax.random.split(key, 3)
    x = jax.random.normal(k_x, (S, B, D), jnp.float32)
    # nn.Parameter(torch.ones(d)) at init; perturb so the multiply is exercised.
    scale = 1.0 + 0.1 * jax.random.normal(k_s, (D,), jnp.float32)

    # Default module config: p = -1.0 (full norm), bias = False.
    out = jax.block_until_ready(rmsnorm_pallas(x, scale, p=-1.0, eps=1e-8))
    ref = rmsnorm_reference(x, scale, p=-1.0, eps=1e-8)
    assert out.shape == x.shape and out.dtype == x.dtype
    assert jnp.allclose(out, ref, atol=1e-4, rtol=1e-4), (
        f"max abs err = {jnp.max(jnp.abs(out - ref))}"
    )

    # Partial-RMSNorm + bias path (p=0.5 -> partial_size=64, unaligned -> mask).
    offset = 0.05 * jax.random.normal(k_o, (D,), jnp.float32)
    out_pb = jax.block_until_ready(rmsnorm_pallas(x, scale, offset, p=0.5, eps=1e-8))
    ref_pb = rmsnorm_reference(x, scale, offset, p=0.5, eps=1e-8)
    assert jnp.allclose(out_pb, ref_pb, atol=1e-4, rtol=1e-4), (
        f"max abs err (partial+bias) = {jnp.max(jnp.abs(out_pb - ref_pb))}"
    )

    # Native bf16 I/O path: bf16 in HBM, f32 compute inside the kernel.
    x_bf = x.astype(jnp.bfloat16)
    out_bf = jax.block_until_ready(rmsnorm_pallas(x_bf, scale, p=-1.0, eps=1e-8))
    assert out_bf.dtype == jnp.bfloat16
    ref_bf = rmsnorm_reference(x_bf.astype(jnp.float32), scale, p=-1.0, eps=1e-8)
    assert jnp.allclose(out_bf.astype(jnp.float32), ref_bf, atol=3e-2, rtol=3e-2), (
        f"max abs err (bf16) = {jnp.max(jnp.abs(out_bf.astype(jnp.float32) - ref_bf))}"
    )

    print("KERNEL_OK")
</pallas_src>

<mosaic_0001>
module attributes {stable_mosaic.version = 11 : i64} {
  func.func @_rmsnorm_kernel(%arg0: i32, %arg1: memref<8x128xf32, #tpu.memory_space<vmem>>, %arg2: memref<1x128xf32, #tpu.memory_space<vmem>>, %arg3: memref<8x128xf32, #tpu.memory_space<vmem>>) attributes {dimension_semantics = [#tpu.dimension_semantics<parallel>], iteration_bounds = array<i64: 2>, scalar_prefetch = 0 : i64, scratch_operands = 0 : i64, tpu.core_type = #tpu.core_type<tc>, window_params = [{transform_indices = @transform_0, window_bounds = array<i64: 8, 128>}, {pipeline_mode = #tpu.pipeline_mode<synchronous>, transform_indices = @transform_1, window_bounds = array<i64: 1, 128>}, {transform_indices = @transform_2, window_bounds = array<i64: 8, 128>}]} {
    %c0 = arith.constant 0 : index
    %c0_0 = arith.constant 0 : index
    %0 = vector.load %arg1[%c0, %c0_0] : memref<8x128xf32, #tpu.memory_space<vmem>>, vector<8x128xf32>
    %1 = arith.mulf %0, %0 : vector<8x128xf32>
    %cst = arith.constant dense<0.000000e+00> : vector<8xf32>
    %2 = vector.multi_reduction <add>, %1, %cst [1] : vector<8x128xf32> to vector<8xf32>
    %3 = vector.shape_cast %2 : vector<8xf32> to vector<8x1xf32>
    %4 = math.sqrt %3 : vector<8x1xf32>
    %cst_1 = arith.constant 0.0883883461 : f32
    %5 = vector.broadcast %cst_1 : f32 to vector<8x1xf32>
    %6 = arith.mulf %4, %5 : vector<8x1xf32>
    %cst_2 = arith.constant 9.99999993E-9 : f32
    %7 = vector.broadcast %cst_2 : f32 to vector<8x1xf32>
    %8 = arith.addf %6, %7 : vector<8x1xf32>
    %cst_3 = arith.constant 1.000000e+00 : f32
    %9 = vector.broadcast %cst_3 : f32 to vector<8x1xf32>
    %10 = arith.divf %9, %8 : vector<8x1xf32>
    %11 = vector.broadcast %10 : vector<8x1xf32> to vector<8x128xf32>
    %12 = arith.mulf %0, %11 : vector<8x128xf32>
    %c0_4 = arith.constant 0 : index
    %c0_5 = arith.constant 0 : index
    %13 = vector.load %arg2[%c0_4, %c0_5] : memref<1x128xf32, #tpu.memory_space<vmem>>, vector<1x128xf32>
    %14 = vector.broadcast %13 : vector<1x128xf32> to vector<8x128xf32>
    %15 = arith.mulf %12, %14 : vector<8x128xf32>
    %c0_6 = arith.constant 0 : index
    %c0_7 = arith.constant 0 : index
    %16 = vector.load %arg3[%c0_6, %c0_7] : memref<8x128xf32, #tpu.memory_space<vmem>>, vector<8x128xf32>
    tpu.vector_store %arg3[%c0_6, %c0_7], %15 {strides = array<i32>} : memref<8x128xf32, #tpu.memory_space<vmem>>, vector<8x128xf32>,
    return
  }
  func.func @transform_0(%arg0: i32) -> (i32, i32) {
    %c0_i32 = arith.constant 0 : i32
    %c0_i32_0 = arith.constant 0 : i32
    return %arg0, %c0_i32 : i32, i32
  }
  func.func @transform_1(%arg0: i32) -> (i32, i32) {
    %c0_i32 = arith.constant 0 : i32
    %c0_i32_0 = arith.constant 0 : i32
    %c0_i32_1 = arith.constant 0 : i32
    return %c0_i32, %c0_i32_0 : i32, i32
  }
  func.func @transform_2(%arg0: i32) -> (i32, i32) {
    %c0_i32 = arith.constant 0 : i32
    %c0_i32_0 = arith.constant 0 : i32
    return %arg0, %c0_i32 : i32, i32
  }
}

</mosaic_0001>

<llo_original>
// kernel: tpu_custom_call.1
$region0: #{tpu_custom_call.1}
  #allocation0 [shape = 'u32[]', space=smem, size = 0x4, offset = 0x4, fixed_abs, tag = 'smem constant byte address 0x4 - core index']
  #allocation1 [shape = 'u32[72,128]{1,0:T(1,128)}', space=vmem, size = 0x9000, scoped, tag = 'internal scratch']
  %s0 = inlined_call_operand.hbm [shape: f32[16,128], index: 0, kind: input, shape index: {}]
  %s1 = inlined_call_operand.hbm [shape: f32[1,128], index: 1, kind: input, shape index: {}]
  %s2 = inlined_call_operand.hbm [shape: f32[16,128], index: 2, kind: output, shape index: {}]
  %s3 = sld [smem:[#allocation0]]
  $region49: #{tpu_custom_call.1} parent=0
    _
  %s5 = ssub.s32 1, %s3
  %s6 = scalar_select 0, %s5, %s3
  $region1: #{tpu_custom_call.1} parent=0
    #allocation2 [shape = 'u8[8192]{0}', space=vmem, size = 0x2000, scoped, tag = 'input window, operand 0']
    #allocation3 [shape = 's32[2]{0}', space=sflag, size = 0x8, scoped, tag = 'scoped memory for tpu_custom_call.1']
    #allocation4 [shape = 's32[2]{0}', space=sflag, size = 0x8, scoped, tag = 'scoped memory for tpu_custom_call.1']
    #allocation5 [shape = 'u8[512]{0}', space=vmem, size = 0x400, scoped, tag = 'input window, operand 1, single buffered']
    #allocation6 [shape = 's32[1]{0}', space=sflag, size = 0x4, scoped, tag = 'scoped memory for tpu_custom_call.1']
    #allocation7 [shape = 'u8[8192]{0}', space=vmem, size = 0x2000, scoped, tag = 'output window, operand 0']
    %7 = vsyncpa [#allocation3], 0
    %s8 = scalar_lea.sflag [#allocation3], 1
    %9 = vsyncpa %s8, 0
    %10 = vsyncpa [#allocation6], 0
    %11 = vsyncpa [#allocation4], 0
    %s12 = scalar_lea.sflag [#allocation4], 1
    %13 = vsyncpa %s12, 0
    loop: start=0, step=1, limit=4
    $region2: #{tpu_custom_call.1} parent=1 // loop_pre_header
      _
    $region3: #{tpu_custom_call.1} parent=1 // loop_header
      %s15 = sphi 0, %s19
      %p16 = scmp.ge.s32.totalorder %s15, 4
      %s25 = sphi 0, %s27
      %s28 = sphi 0, %s25
      %s29 = sphi 0, %s28
      %s45 = sphi 0, %s29
      %s49 = sphi 0, %s49
      %s51 = sphi 0, %s49
      %s52 = sphi 0, %s51
      %s66 = sphi 0, %s52
      %s72 = sphi 0, %s74
      %s75 = sphi 0, %s72
      %s76 = sphi 0, %s75
      %s92 = sphi 0, %s76
    $region4: #{tpu_custom_call.1} parent=1 // loop_header_branch
      %18 = sbr.rel (%p16) target = $region8
    $region5: #{tpu_custom_call.1} parent=1 // loop_body
      %s20 = ssub.s32 %s15, 1
      %s21 = ssub.s32 %s15, 2
      %s22 = sadd.s32 %s15, 1
      %s23 = ssub.s32 %s15, %s22
      %p24 = scmp.eq.s32.totalorder %s23, 0
      %s26 = sadd.s32 %s25, 1
      %s27 = scalar_select %p24, %s25, %s26
      %p30 = pneg %p24
      %p31 = scmp.eq.s32.totalorder %s15, 1
      %p32 = por %p30, %p31
      %p33 = scmp.ne.s32.totalorder %s25, %s28
      %p34 = scmp.eq.s32.totalorder %s15, 0
      %p35 = por %p33, %p34
      %p36 = scmp.ne.s32.totalorder %s25, %s28
      %p37 = scmp.eq.s32.totalorder %s20, 1
      %p38 = por %p36, %p37
      %p39 = scmp.ne.s32.totalorder %s28, %s29
      %p40 = scmp.eq.s32.totalorder %s20, 0
      %p41 = por %p39, %p40
      %p42 = scmp.ne.s32.totalorder %s28, %s29
      %p43 = scmp.eq.s32.totalorder %s21, 1
      %p44 = por %p42, %p43
      %p46 = scmp.ne.s32.totalorder %s29, %s45
      %p47 = scmp.eq.s32.totalorder %s21, 0
      %p48 = por %p46, %p47
      %s50 = sadd.s32 %s49, 1
      %p53 = scmp.eq.s32.totalorder %s15, 1
      %p54 = scmp.ne.s32.totalorder %s49, %s51
      %p55 = scmp.eq.s32.totalorder %s15, 0
      %p56 = por %p54, %p55
      %p57 = scmp.ne.s32.totalorder %s49, %s51
      %p58 = scmp.eq.s32.totalorder %s20, 1
      %p59 = por %p57, %p58
      %p60 = scmp.ne.s32.totalorder %s51, %s52
      %p61 = scmp.eq.s32.totalorder %s20, 0
      %p62 = por %p60, %p61
      %p63 = scmp.ne.s32.totalorder %s51, %s52
      %p64 = scmp.eq.s32.totalorder %s21, 1
      %p65 = por %p63, %p64
      %p67 = scmp.ne.s32.totalorder %s52, %s66
      %p68 = scmp.eq.s32.totalorder %s21, 0
      %p69 = por %p67, %p68
      %s70 = ssub.s32 %s15, %s22
      %p71 = scmp.eq.s32.totalorder %s70, 0
      %s73 = sadd.s32 %s72, 1
      %s74 = scalar_select %p71, %s72, %s73
      %p77 = pneg %p71
      %p78 = scmp.eq.s32.totalorder %s15, 1
      %p79 = por %p77, %p78
      %p80 = scmp.ne.s32.totalorder %s72, %s75
      %p81 = scmp.eq.s32.totalorder %s15, 0
      %p82 = por %p80, %p81
      %p83 = scmp.ne.s32.totalorder %s72, %s75
      %p84 = scmp.eq.s32.totalorder %s20, 1
      %p85 = por %p83, %p84
      %p86 = scmp.ne.s32.totalorder %s75, %s76
      %p87 = scmp.eq.s32.totalorder %s20, 0
      %p88 = por %p86, %p87
      %p89 = scmp.ne.s32.totalorder %s75, %s76
      %p90 = scmp.eq.s32.totalorder %s21, 1
      %p91 = por %p89, %p90
      %p93 = scmp.ne.s32.totalorder %s76, %s92
      %p94 = scmp.eq.s32.totalorder %s21, 0
      %p95 = por %p93, %p94
      %p96 = scmp.le.s32.totalorder 1, %s15
      %p97 = scmp.lt.s32.totalorder %s15, 3
      %p98 = pnand %p96, %p97
      %p99 = pneg %p98
      // Predicated region
      $region9: #{tpu_custom_call.1} parent=5 // pred_check
        _
      $region10: #{tpu_custom_call.1} parent=5 // pred_check_branch
        %101 = sbr.rel (%p98) target = $region12
      $region11: #{tpu_custom_call.1} parent=5 // pred_region
        %s102 = ssub.s32 %s15, 1
        // Predicated region
        $region13: #{tpu_custom_call.1} parent=11 // pred_check
          %p103 = pneg %p62
        $region14: #{tpu_custom_call.1} parent=11 // pred_check_branch
          %105 = sbr.rel (%p103) target = $region16
        $region15: #{tpu_custom_call.1} parent=11 // pred_region
          %107 = vsyncadd [#allocation6], 0
          %s109 = sshll.u32 %s1, 4
          %s110 = int_to_ptr.hbm [resolvable:$true] %s109
          %s111 = sshll.u32 [#allocation5], 4
          %s112 = int_to_ptr.vmem [resolvable:$true] %s111
          %114 = dma.hbm_to_vmem [thread:$0]  %s110, 16, %s112, [#allocation6]
        $region16: #{tpu_custom_call.1} parent=11 // pred_fallthru
          _
      $region12: #{tpu_custom_call.1} parent=5 // pred_fallthru
        _
      %p115 = scmp.lt.s32.totalorder %s15, 2
      // Predicated region
      $region17: #{tpu_custom_call.1} parent=5 // pred_check
        %p116 = pneg %p115
      $region18: #{tpu_custom_call.1} parent=5 // pred_check_branch
        %118 = sbr.rel (%p116) target = $region20
      $region19: #{tpu_custom_call.1} parent=5 // pred_region
        // Predicated region
        $region21: #{tpu_custom_call.1} parent=19 // pred_check
          %p119 = pneg %p35
        $region22: #{tpu_custom_call.1} parent=19 // pred_check_branch
          %121 = sbr.rel (%p119) target = $region24
        $region23: #{tpu_custom_call.1} parent=19 // pred_region
          %s122 = sand.u32 %s25, 1
          %s123 = scalar_lea.sflag [#allocation3], %s122
          %s124 = sand.u32 %s25, 1
          %s125 = smul.addr %s124, 8
          %s126 = scalar_lea.vmem [#allocation2], %s125
          %128 = vsyncadd %s123, 0
          %s129 = smul.addr %s15, 8
          %s130 = scalar_lea.hbm %s0, %s129
          %s132 = sshll.u32 %s130, 4
          %s133 = int_to_ptr.hbm [resolvable:$true] %s132
          %s134 = sshll.u32 %s126, 4
          %s135 = int_to_ptr.vmem [resolvable:$true] %s134
          %137 = dma.hbm_to_vmem [thread:$0]  %s133, 128, %s135, %s123
        $region24: #{tpu_custom_call.1} parent=19 // pred_fallthru
          _
      $region20: #{tpu_custom_call.1} parent=5 // pred_fallthru
        _
      %p138 = scmp.le.s32.totalorder 1, %s15
      %p139 = scmp.lt.s32.totalorder %s15, 3
      %p140 = pnand %p138, %p139
      %p141 = pneg %p140
      // Predicated region
      $region25: #{tpu_custom_call.1} parent=5 // pred_check
        _
      $region26: #{tpu_custom_call.1} parent=5 // pred_check_branch
        %143 = sbr.rel (%p140) target = $region28
      $region27: #{tpu_custom_call.1} parent=5 // pred_region
        %s144 = ssub.s32 %s15, 1
        %s145 = sand.u32 %s28, 1
        %s146 = scalar_lea.sflag [#allocation3], %s145
        %s147 = sand.u32 %s28, 1
        %s148 = smul.addr %s147, 8
        %s149 = scalar_lea.vmem [#allocation2], %s148
        // Predicated region
        $region29: #{tpu_custom_call.1} parent=27 // pred_check
          %p150 = pneg %p41
        $region30: #{tpu_custom_call.1} parent=27 // pred_check_branch
          %152 = sbr.rel (%p150) target = $region32
        $region31: #{tpu_custom_call.1} parent=27 // pred_region
          %154 = dma.done %s146, 128
        $region32: #{tpu_custom_call.1} parent=27 // pred_fallthru
          _
        // Predicated region
        $region33: #{tpu_custom_call.1} parent=27 // pred_check
          %p155 = pneg %p62
        $region34: #{tpu_custom_call.1} parent=27 // pred_check_branch
          %157 = sbr.rel (%p155) target = $region36
        $region35: #{tpu_custom_call.1} parent=27 // pred_region
          %159 = dma.done [#allocation6], 16
        $region36: #{tpu_custom_call.1} parent=27 // pred_fallthru
          _
        %s160 = sand.u32 %s28, 1
        %s161 = scalar_lea.sflag [#allocation3], %s160
        %s162 = sand.u32 %s28, 1
        %s163 = smul.addr %s162, 8
        %s164 = scalar_lea.vmem [#allocation2], %s163
        %p165 = pneg %p41
        %p166 = pneg %p38
        %p167 = pneg %p62
        %p168 = pneg %p59
        %p169 = pneg %p88
        %p170 = pneg %p85
        %s171 = sand.u32 %s75, 1
        %s172 = scalar_lea.sflag [#allocation4], %s171
        %s173 = sand.u32 %s75, 1
        %s174 = smul.addr %s173, 8
        %s175 = scalar_lea.vmem [#allocation7], %s174
        %v176 = vld [vmem:[%s149] sm:$0xff]
        %v177 = vmul.f32 %v176, %v176
        %178 = vadd.xlane.f32.xlu0 %v177
        %v179 = vpop.xlane.xlu0 %178
        %v180 = vrsqrt.pop %v179
        %v181 = vmul.f32 %v180, %v179
        %v182 = vmul.f32 %v181, %v180
        %v183 = vmul.f32 0.5, %v182
        %v184 = vsub.f32 1.5, %v183
        %v185 = vmul.f32 %v180, %v184
        %v186 = vmul.f32 %v179, %v185
        %vm187 = vcmp.eq.f32.partialorder %v179, inf
        %v188 = vsel %vm187, %v179, %v186
        %vm189 = vcmp.eq.f32.partialorder %v179, 0.0
        %v190 = vand.u32 %v179, 2147483648
        %v191 = vsel %vm189, %v190, %v188
        %v192 = vmul.f32 %v191, 0.088388346
        %v193 = vadd.f32 %v192, 1e-08
        %v194 = vrcp.pop %v193
        %v195 = vmul.f32 %v193, %v194
        %v196 = vsub.f32 1.0, %v195
        %v197 = vmul.f32 %v194, %v196
        %v198 = vadd.f32 %v194, %v197
        %vm199 = vweird.f32 %v193
        %vm200 = vweird.f32 %v194
        %vm201 = vmor %vm199, %vm200
        %v202 = vsel %vm201, %v194, %v198
        %v203 = vand.u32 2147483647, %v193
        %vm204 = vcmp.eq.f32.partialorder %v203, 8.507059e+37
        %v205 = vand.u32 %v193, 2147483648
        %v206 = vor.u32 1.1754944e-38, %v205
        %v207 = vsel %vm204, %v206, %v202
        %v208 = vmul.f32 1.0, %v207
        %v209 = vmul.f32 %v176, %v208
        %v210 = vld [vmem:[#allocation5] sm:$0x1]
        %v212 = vperm.slane %v210, 0
        %v214 = vmul.f32 %v209, %v212
        %215 = vst [vmem:[%s175] sm:$0xff] %v214
        %s216 = sand.u32 %s75, 1
        %s217 = scalar_lea.sflag [#allocation4], %s216
        %s218 = sand.u32 %s75, 1
        %s219 = smul.addr %s218, 8
        %s220 = scalar_lea.vmem [#allocation7], %s219
        // Predicated region
        $region37: #{tpu_custom_call.1} parent=27 // pred_check
          %p221 = pneg %p85
        $region38: #{tpu_custom_call.1} parent=27 // pred_check_branch
          %223 = sbr.rel (%p221) target = $region40
        $region39: #{tpu_custom_call.1} parent=27 // pred_region
          %225 = vsyncadd %s217, 0
          %s226 = smul.addr %s20, 8
          %s227 = scalar_lea.hbm %s2, %s226
          %s229 = sshll.u32 %s220, 4
          %s230 = int_to_ptr.vmem [resolvable:$true] %s229
          %s231 = sshll.u32 %s227, 4
          %s232 = int_to_ptr.hbm [resolvable:$true] %s231
          %234 = dma.vmem_to_hbm [thread:$0]  %s230, 128, %s232, %s217
        $region40: #{tpu_custom_call.1} parent=27 // pred_fallthru
          _
      $region28: #{tpu_custom_call.1} parent=5 // pred_fallthru
        _
      %p235 = scmp.le.s32.totalorder 2, %s15
      // Predicated region
      $region41: #{tpu_custom_call.1} parent=5 // pred_check
        %p236 = pneg %p235
      $region42: #{tpu_custom_call.1} parent=5 // pred_check_branch
        %238 = sbr.rel (%p236) target = $region44
      $region43: #{tpu_custom_call.1} parent=5 // pred_region
        %s239 = ssub.s32 %s15, 2
        // Predicated region
        $region45: #{tpu_custom_call.1} parent=43 // pred_check
          %p240 = pneg %p91
        $region46: #{tpu_custom_call.1} parent=43 // pred_check_branch
          %242 = sbr.rel (%p240) target = $region48
        $region47: #{tpu_custom_call.1} parent=43 // pred_region
          %s243 = sand.u32 %s76, 1
          %s244 = scalar_lea.sflag [#allocation4], %s243
          %s245 = sand.u32 %s76, 1
          %s246 = smul.addr %s245, 8
          %s247 = scalar_lea.vmem [#allocation7], %s246
          %249 = dma.done %s244, 128
        $region48: #{tpu_custom_call.1} parent=43 // pred_fallthru
          _
      $region44: #{tpu_custom_call.1} parent=5 // pred_fallthru
        _
    $region6: #{tpu_custom_call.1} parent=1 // loop_footer
      %s19 = sadd.s32 1, %s15
    $region7: #{tpu_custom_call.1} parent=1 // loop_footer_branch
      %14 = sbr.rel target = $region3
    $region8: #{tpu_custom_call.1} parent=1 // loop_exit
      _
    %250 = vsyncpa [#allocation3], 1
    %s251 = scalar_lea.sflag [#allocation3], 1
    %252 = vsyncpa %s251, 1
    %253 = vsyncpa [#allocation6], 1
    %254 = vsyncpa [#allocation4], 1
    %s255 = scalar_lea.sflag [#allocation4], 1
    %256 = vsyncpa %s255, 1

</llo_original>
